<compile_context>
chip_gen: v7x
topology: tpu7x:2x2x1
jax: 0.10.0
libtpu: 0.0.40
codegen_flags: <defaults>
</compile_context>

<pallas_src>
import functools

import jax
import jax.numpy as jnp
from jax.experimental import pallas as pl
from jax.experimental.pallas import tpu as pltpu


def _round_up(n: int, m: int) -> int:
    return ((n + m - 1) // m) * m


# ----------------------------------------------------------------------------------
# Kernel
# ----------------------------------------------------------------------------------
def _mlp_fused_kernel(*refs, n_layers: int):
    """refs = (x_ref, w1_ref, b1_ref, ..., wN_ref, bN_ref, o_ref).

    Computes y = (relu(x@W1 + b1)) @ W2 + b2 ... @ WN + bN for one batch tile.
    Matmul operands are bf16 (MXU-native), accumulation + elementwise math are f32.
    """
    x_ref = refs[0]
    o_ref = refs[-1]
    h = x_ref[...].astype(jnp.float32)                     # [TB, in_f] f32
    for i in range(n_layers):
        w = refs[1 + 2 * i][...]                           # bf16 [d_in, d_out]
        b = refs[2 + 2 * i][...]                           # f32  [1,    d_out]
        h = jnp.dot(h.astype(jnp.bfloat16), w,
                    preferred_element_type=jnp.float32) + b
        if i != n_layers - 1:
            h = jnp.maximum(h, 0.0)                        # ReLU between hidden layers
            # TODO(synk): training-mode dropout (pltpu.prng_* masking) not implemented;
            # eval-mode forward only (F.dropout is identity when training=False).
    o_ref[...] = h.astype(o_ref.dtype)


# ----------------------------------------------------------------------------------
# Parameter construction / preparation
# ----------------------------------------------------------------------------------
def init_mlp_params(key, input_size, layer_sizes, output_size):
    """PyTorch nn.Linear-style U(-1/sqrt(fan_in), 1/sqrt(fan_in)) init.

    Weights are stored already transposed to [in, out] so the kernel hot path is a
    plain MXU matmul.
    """
    dims = [input_size] + list(layer_sizes) + [output_size]
    params = []
    for i in range(len(dims) - 1):
        fan_in, fan_out = dims[i], dims[i + 1]
        key, kw, kb = jax.random.split(key, 3)
        bound = 1.0 / jnp.sqrt(jnp.float32(fan_in))
        w_t = jax.random.uniform(kw, (fan_in, fan_out), jnp.float32,
                                 minval=-bound, maxval=bound)
        b = jax.random.uniform(kb, (1, fan_out), jnp.float32,
                               minval=-bound, maxval=bound)
        params.append((w_t, b))
    return params


def prepare_params(params, *, lane=128):
    """Zero-pad *hidden* feature dims to a lane multiple and cast weights to bf16.

    Input/output dims keep their true widths (no wrapper pad/slice needed).  Padded
    hidden columns have zero weights and zero bias; ReLU(0)=0 and they multiply zero
    rows of the next layer's weight, so they never leak into real outputs.  Biases
    stay f32 (bias-add / ReLU run in f32 inside the kernel).
    """
    dims = [params[0][0].shape[0]] + [w.shape[1] for (w, _) in params]
    pdims = list(dims)
    for i in range(1, len(dims) - 1):            # only hidden dims are padded
        pdims[i] = _round_up(dims[i], lane)
    prepared = []
    for i, (w, b) in enumerate(params):
        w_p = jnp.zeros((pdims[i], pdims[i + 1]), jnp.bfloat16)
        w_p = w_p.at[:w.shape[0], :w.shape[1]].set(w.astype(jnp.bfloat16))
        b_p = jnp.zeros((1, pdims[i + 1]), jnp.float32).at[:, :b.shape[1]].set(b)
        prepared.append((w_p, b_p))
    return prepared, dims, pdims


# ----------------------------------------------------------------------------------
# Batch tiling policy
# ----------------------------------------------------------------------------------
def _choose_batch_tiling(batch, batch_tile):
    """Pick (tile_rows, padded_batch).

    Prefers >=2 tiles (so the 'parallel' grid axis can shard across v7x's 2 TCs),
    then minimal padded batch, then the largest tile.  Tiles are capped at 256 rows
    so a [tile, 128] f32 intermediate never blows the 64-vreg register file.
    """
    batch_tile = max(8, min(batch_tile, 256))
    if batch <= 8:
        return batch, batch                      # one full-dim tile, zero padding
    b8 = _round_up(batch, 8)
    best = None
    for t in (256, 128, 64, 32, 16, 8):
        if t > batch_tile:
            continue
        bp = _round_up(b8, t)
        key = (0 if bp // t >= 2 else 1, bp, -t)
        if best is None or key < best[0]:
            best = (key, t, bp)
    return best[1], best[2]


# ----------------------------------------------------------------------------------
# Forward wrapper
# ----------------------------------------------------------------------------------
def mlp_forward(prepared_params, dims, pdims, x, *, batch_tile=256):
    """Fused forward. x: [B, input_size] f32 -> [B, output_size] f32."""
    batch, in_f = x.shape
    assert in_f == dims[0]
    out_f = dims[-1]
    n_layers = len(prepared_params)

    tb, b_pad = _choose_batch_tiling(batch, batch_tile)
    if b_pad != batch:
        # Only the batch (sublane) axis may need padding; feature dims stay true-width.
        x_in = jnp.zeros((b_pad, in_f), x.dtype).at[:batch].set(x)
    else:
        x_in = x

    flat_inputs = [x_in]
    in_specs = [pl.BlockSpec((tb, in_f), lambda i: (i, 0))]        # batch-tiled input
    for (w_p, b_p) in prepared_params:
        flat_inputs += [w_p, b_p]
        # Constant index_maps: fetched once from HBM, resident across all batch tiles.
        in_specs.append(pl.BlockSpec(w_p.shape, lambda i: (0, 0)))
        in_specs.append(pl.BlockSpec(b_p.shape, lambda i: (0, 0)))

    # ---- cost estimate + generation-safe VMEM limit --------------------------------
    nbytes = lambda a: a.size * a.dtype.itemsize
    wb_bytes = sum(nbytes(w) + nbytes(b) for (w, b) in prepared_params)
    x_bytes = b_pad * in_f * 4
    out_bytes = b_pad * out_f * 4
    flops = 2 * b_pad * sum(pdims[i] * pdims[i + 1] for i in range(n_layers))
    cost = pl.CostEstimate(flops=flops, transcendentals=0,
                           bytes_accessed=x_bytes + wb_bytes + out_bytes)

    max_pdim = max(pdims)
    vmem_need = (2 * tb * in_f * 4             # double-buffered x tile
                 + 2 * tb * out_f * 4          # double-buffered out tile
                 + 2 * wb_bytes                # weights/biases (default double-buffered)
                 + 4 * tb * max_pdim * 4)      # f32 activation scratch headroom
    vmem_limit = int(min(48 * 1024 * 1024, max(4 * 1024 * 1024, 2 * vmem_need)))

    kernel = functools.partial(_mlp_fused_kernel, n_layers=n_layers)
    out = pl.pallas_call(
        kernel,
        out_shape=jax.ShapeDtypeStruct((b_pad, out_f), jnp.float32),
        grid=(b_pad // tb,),
        in_specs=in_specs,
        out_specs=pl.BlockSpec((tb, out_f), lambda i: (i, 0)),
        compiler_params=pltpu.CompilerParams(
            dimension_semantics=("parallel",),   # megacore sharding over batch tiles
            vmem_limit_bytes=vmem_limit,
        ),
        cost_estimate=cost,
    )(*flat_inputs)

    return out[:batch] if b_pad != batch else out


# ----------------------------------------------------------------------------------
# Plain-JAX references
# ----------------------------------------------------------------------------------
def mlp_reference(params, x, *, bf16_weights=False):
    """Eval-mode reference. bf16_weights=True mirrors the kernel's numerics."""
    n_layers = len(params)
    h = x.astype(jnp.float32)
    for i, (w, b) in enumerate(params):
        if bf16_weights:
            h = jnp.dot(h.astype(jnp.bfloat16), w.astype(jnp.bfloat16),
                        preferred_element_type=jnp.float32) + b
        else:
            h = h @ w + b
        if i != n_layers - 1:
            h = jnp.maximum(h, 0.0)
    return h


if __name__ == "__main__":
    key = jax.random.PRNGKey(0)
    k_params, k_x = jax.random.split(key)

    input_size = 16
    layer_sizes = [32, 32]
    output_size = 8
    batch = 4

    params = init_mlp_params(k_params, input_size, layer_sizes, output_size)
    x = jax.random.normal(k_x, (batch, input_size), jnp.float32)

    prepared, dims, pdims = prepare_params(params)

    fwd = jax.jit(functools.partial(mlp_forward, prepared, dims, pdims))
    out = jax.block_until_ready(fwd(x))
    assert out.shape == (batch, output_size)

    # Tight check vs. a reference that mirrors the kernel's bf16-operand / f32-accum math.
    ref_bf16 = mlp_reference(params, x, bf16_weights=True)
    assert jnp.allclose(out, ref_bf16, atol=5e-3, rtol=5e-3), "mismatch vs bf16 reference"

    # Looser sanity check vs. the pure-f32 PyTorch-equivalent forward (bf16 weight rounding).
    ref_f32 = mlp_reference(params, x, bf16_weights=False)
    assert jnp.allclose(out, ref_f32, atol=5e-2, rtol=5e-2), "mismatch vs f32 reference"

    print("KERNEL_OK")
</pallas_src>

<mosaic_0001>
module attributes {stable_mosaic.version = 11 : i64} {
  func.func @_mlp_fused_kernel(%arg0: i32, %arg1: memref<4x16xf32, #tpu.memory_space<vmem>>, %arg2: memref<16x128xbf16, #tpu.memory_space<vmem>>, %arg3: memref<1x128xf32, #tpu.memory_space<vmem>>, %arg4: memref<128x128xbf16, #tpu.memory_space<vmem>>, %arg5: memref<1x128xf32, #tpu.memory_space<vmem>>, %arg6: memref<128x8xbf16, #tpu.memory_space<vmem>>, %arg7: memref<1x8xf32, #tpu.memory_space<vmem>>, %arg8: memref<4x8xf32, #tpu.memory_space<vmem>>) attributes {dimension_semantics = [#tpu.dimension_semantics<parallel>], iteration_bounds = array<i64: 1>, scalar_prefetch = 0 : i64, scratch_operands = 0 : i64, tpu.core_type = #tpu.core_type<tc>, window_params = [{transform_indices = @transform_0, window_bounds = array<i64: 4, 16>}, {pipeline_mode = #tpu.pipeline_mode<synchronous>, transform_indices = @transform_1, window_bounds = array<i64: 16, 128>}, {pipeline_mode = #tpu.pipeline_mode<synchronous>, transform_indices = @transform_2, window_bounds = array<i64: 1, 128>}, {pipeline_mode = #tpu.pipeline_mode<synchronous>, transform_indices = @transform_3, window_bounds = array<i64: 128, 128>}, {pipeline_mode = #tpu.pipeline_mode<synchronous>, transform_indices = @transform_4, window_bounds = array<i64: 1, 128>}, {pipeline_mode = #tpu.pipeline_mode<synchronous>, transform_indices = @transform_5, window_bounds = array<i64: 128, 8>}, {pipeline_mode = #tpu.pipeline_mode<synchronous>, transform_indices = @transform_6, window_bounds = array<i64: 1, 8>}, {transform_indices = @transform_7, window_bounds = array<i64: 4, 8>}]} {
    %c0 = arith.constant 0 : index
    %c0_0 = arith.constant 0 : index
    %0 = vector.load %arg1[%c0, %c0_0] : memref<4x16xf32, #tpu.memory_space<vmem>>, vector<4x16xf32>
    %c0_1 = arith.constant 0 : index
    %c0_2 = arith.constant 0 : index
    %1 = vector.load %arg2[%c0_1, %c0_2] : memref<16x128xbf16, #tpu.memory_space<vmem>>, vector<16x128xbf16>
    %c0_3 = arith.constant 0 : index
    %c0_4 = arith.constant 0 : index
    %2 = vector.load %arg3[%c0_3, %c0_4] : memref<1x128xf32, #tpu.memory_space<vmem>>, vector<1x128xf32>
    %3 = arith.truncf %0 : vector<4x16xf32> to vector<4x16xbf16>
    %cst = arith.constant dense<0.000000e+00> : vector<4x128xf32>
    %4 = tpu.matmul %3, %1, %cst {dimension_numbers = #tpu.dot_dimension_numbers<[1], [0], [0], [1], [0, 0, 1, 1], [], []>} : vector<4x16xbf16>, vector<16x128xbf16>, vector<4x128xf32> -> vector<4x128xf32>
    %5 = vector.broadcast %2 : vector<1x128xf32> to vector<4x128xf32>
    %6 = arith.addf %4, %5 : vector<4x128xf32>
    %cst_5 = arith.constant 0.000000e+00 : f32
    %7 = vector.broadcast %cst_5 : f32 to vector<4x128xf32>
    %8 = arith.maximumf %6, %7 : vector<4x128xf32>
    %c0_6 = arith.constant 0 : index
    %c0_7 = arith.constant 0 : index
    %9 = vector.load %arg4[%c0_6, %c0_7] : memref<128x128xbf16, #tpu.memory_space<vmem>>, vector<128x128xbf16>
    %c0_8 = arith.constant 0 : index
    %c0_9 = arith.constant 0 : index
    %10 = vector.load %arg5[%c0_8, %c0_9] : memref<1x128xf32, #tpu.memory_space<vmem>>, vector<1x128xf32>
    %11 = arith.truncf %8 : vector<4x128xf32> to vector<4x128xbf16>
    %cst_10 = arith.constant dense<0.000000e+00> : vector<4x128xf32>
    %12 = tpu.matmul %11, %9, %cst_10 {dimension_numbers = #tpu.dot_dimension_numbers<[1], [0], [0], [1], [0, 0, 1, 1], [], []>} : vector<4x128xbf16>, vector<128x128xbf16>, vector<4x128xf32> -> vector<4x128xf32>
    %13 = vector.broadcast %10 : vector<1x128xf32> to vector<4x128xf32>
    %14 = arith.addf %12, %13 : vector<4x128xf32>
    %cst_11 = arith.constant 0.000000e+00 : f32
    %15 = vector.broadcast %cst_11 : f32 to vector<4x128xf32>
    %16 = arith.maximumf %14, %15 : vector<4x128xf32>
    %c0_12 = arith.constant 0 : index
    %c0_13 = arith.constant 0 : index
    %17 = vector.load %arg6[%c0_12, %c0_13] : memref<128x8xbf16, #tpu.memory_space<vmem>>, vector<128x8xbf16>
    %c0_14 = arith.constant 0 : index
    %c0_15 = arith.constant 0 : index
    %18 = vector.load %arg7[%c0_14, %c0_15] : memref<1x8xf32, #tpu.memory_space<vmem>>, vector<1x8xf32>
    %19 = arith.truncf %16 : vector<4x128xf32> to vector<4x128xbf16>
    %cst_16 = arith.constant dense<0.000000e+00> : vector<4x8xf32>
    %20 = tpu.matmul %19, %17, %cst_16 {dimension_numbers = #tpu.dot_dimension_numbers<[1], [0], [0], [1], [0, 0, 1, 1], [], []>} : vector<4x128xbf16>, vector<128x8xbf16>, vector<4x8xf32> -> vector<4x8xf32>
    %21 = vector.broadcast %18 : vector<1x8xf32> to vector<4x8xf32>
    %22 = arith.addf %20, %21 : vector<4x8xf32>
    %c0_17 = arith.constant 0 : index
    %c0_18 = arith.constant 0 : index
    %23 = vector.load %arg8[%c0_17, %c0_18] : memref<4x8xf32, #tpu.memory_space<vmem>>, vector<4x8xf32>
    tpu.vector_store %arg8[%c0_17, %c0_18], %22 {strides = array<i32>} : memref<4x8xf32, #tpu.memory_space<vmem>>, vector<4x8xf32>,
    return
  }
  func.func @transform_0(%arg0: i32) -> (i32, i32) {
    %c0_i32 = arith.constant 0 : i32
    %c0_i32_0 = arith.constant 0 : i32
    return %arg0, %c0_i32 : i32, i32
  }
  func.func @transform_1(%arg0: i32) -> (i32, i32) {
    %c0_i32 = arith.constant 0 : i32
    %c0_i32_0 = arith.constant 0 : i32
    %c0_i32_1 = arith.constant 0 : i32
    return %c0_i32, %c0_i32_0 : i32, i32
  }
  func.func @transform_2(%arg0: i32) -> (i32, i32) {
    %c0_i32 = arith.constant 0 : i32
    %c0_i32_0 = arith.constant 0 : i32
    %c0_i32_1 = arith.constant 0 : i32
    return %c0_i32, %c0_i32_0 : i32, i32
  }
  func.func @transform_3(%arg0: i32) -> (i32, i32) {
    %c0_i32 = arith.constant 0 : i32
    %c0_i32_0 = arith.constant 0 : i32
    %c0_i32_1 = arith.constant 0 : i32
    return %c0_i32, %c0_i32_0 : i32, i32
  }
  func.func @transform_4(%arg0: i32) -> (i32, i32) {
    %c0_i32 = arith.constant 0 : i32
    %c0_i32_0 = arith.constant 0 : i32
    %c0_i32_1 = arith.constant 0 : i32
    return %c0_i32, %c0_i32_0 : i32, i32
  }
  func.func @transform_5(%arg0: i32) -> (i32, i32) {
    %c0_i32 = arith.constant 0 : i32
    %c0_i32_0 = arith.constant 0 : i32
    %c0_i32_1 = arith.constant 0 : i32
    return %c0_i32, %c0_i32_0 : i32, i32
  }
  func.func @transform_6(%arg0: i32) -> (i32, i32) {
    %c0_i32 = arith.constant 0 : i32
    %c0_i32_0 = arith.constant 0 : i32
    %c0_i32_1 = arith.constant 0 : i32
    return %c0_i32, %c0_i32_0 : i32, i32
  }
  func.func @transform_7(%arg0: i32) -> (i32, i32) {
    %c0_i32 = arith.constant 0 : i32
    %c0_i32_0 = arith.constant 0 : i32
    return %arg0, %c0_i32 : i32, i32
  }
}

</mosaic_0001>

<llo_original>
// kernel: mlp_forward.1
$region0: #{mlp_forward.1}
  #allocation0 [shape = 'u32[]', space=smem, size = 0x4, offset = 0x4, fixed_abs, tag = 'smem constant byte address 0x4 - core index']
  #allocation1 [shape = 'u32[144,128]{1,0:T(1,128)}', space=vmem, size = 0x12000, scoped, tag = 'internal scratch']
  %s0 = inlined_call_operand.vmem [shape: f32[4,16], index: 0, kind: input, shape index: {}]
  %s1 = inlined_call_operand.vmem [shape: bf16[16,128], index: 1, kind: input, shape index: {}]
  %s2 = inlined_call_operand.vmem [shape: f32[1,128], index: 2, kind: input, shape index: {}]
  %s3 = inlined_call_operand.hbm [shape: bf16[128,128], index: 3, kind: input, shape index: {}]
  %s4 = inlined_call_operand.vmem [shape: f32[1,128], index: 4, kind: input, shape index: {}]
  %s5 = inlined_call_operand.hbm [shape: bf16[128,8], index: 5, kind: input, shape index: {}]
  %s6 = inlined_call_operand.vmem [shape: f32[1,8], index: 6, kind: input, shape index: {}]
  %s7 = inlined_call_operand.hbm [shape: f32[4,8], index: 7, kind: output, shape index: {}]
  %s8 = sld [smem:[#allocation0]]
  $region46: #{mlp_forward.1} parent=0
    _
  %s10 = ssub.s32 1, %s8
  %s11 = scalar_select 0, %s10, %s8
  $region1: #{mlp_forward.1} parent=0
    #allocation2 [shape = 'u8[32768]{0}', space=vmem, size = 0x8000, scoped, tag = 'input window, operand 3, single buffered']
    #allocation3 [shape = 's32[1]{0}', space=sflag, size = 0x4, scoped, tag = 'scoped memory for mlp_forward.1']
    #allocation4 [shape = 's32[1]{0}', space=sflag, size = 0x4, scoped, tag = 'scoped memory for mlp_forward.1']
    #allocation5 [shape = 'u8[32768]{0}', space=vmem, size = 0x8000, scoped, tag = 'input window, operand 5, single buffered']
    #allocation6 [shape = 's32[1]{0}', space=sflag, size = 0x4, scoped, tag = 'scoped memory for mlp_forward.1']
    #allocation7 [shape = 'u8[2048]{0}', space=vmem, size = 0x800, scoped, tag = 'output window, operand 0, single buffered']
    %12 = vsyncpa [#allocation3], 0
    %13 = vsyncpa [#allocation6], 0
    %14 = vsyncpa [#allocation4], 0
    // Predicated region
    $region2: #{mlp_forward.1} parent=1 // pred_check
      _
    $region3: #{mlp_forward.1} parent=1 // pred_check_branch
      %16 = sbr.rel (0) target = $region5
    $region4: #{mlp_forward.1} parent=1 // pred_region
      _
    $region5: #{mlp_forward.1} parent=1 // pred_fallthru
      _
    // Predicated region
    $region6: #{mlp_forward.1} parent=1 // pred_check
      _
    $region7: #{mlp_forward.1} parent=1 // pred_check_branch
      %18 = sbr.rel (0) target = $region9
    $region8: #{mlp_forward.1} parent=1 // pred_region
      _
    $region9: #{mlp_forward.1} parent=1 // pred_fallthru
      _
    // Predicated region
    $region10: #{mlp_forward.1} parent=1 // pred_check
      _
    $region11: #{mlp_forward.1} parent=1 // pred_check_branch
      %20 = sbr.rel (0) target = $region13
    $region12: #{mlp_forward.1} parent=1 // pred_region
      _
    $region13: #{mlp_forward.1} parent=1 // pred_fallthru
      _
    // Predicated region
    $region14: #{mlp_forward.1} parent=1 // pred_check
      _
    $region15: #{mlp_forward.1} parent=1 // pred_check_branch
      %22 = sbr.rel (0) target = $region17
    $region16: #{mlp_forward.1} parent=1 // pred_region
      %s24 = ssub.s32 1024, 1024
      %25 = vsyncadd [#allocation3], %s24
      %s26 = sshll.u32 [#allocation2], 4
      %s27 = int_to_ptr.vmem [resolvable:$true] %s26
      %32 = dma.hbm_to_vmem [thread:$0]  %s3, 1024, %s27, [#allocation3], 64, 64, 4
    $region17: #{mlp_forward.1} parent=1 // pred_fallthru
      _
    // Predicated region
    $region18: #{mlp_forward.1} parent=1 // pred_check
      _
    $region19: #{mlp_forward.1} parent=1 // pred_check_branch
      %34 = sbr.rel (0) target = $region21
    $region20: #{mlp_forward.1} parent=1 // pred_region
      _
    $region21: #{mlp_forward.1} parent=1 // pred_fallthru
      _
    // Predicated region
    $region22: #{mlp_forward.1} parent=1 // pred_check
      _
    $region23: #{mlp_forward.1} parent=1 // pred_check_branch
      %36 = sbr.rel (0) target = $region25
    $region24: #{mlp_forward.1} parent=1 // pred_region
      %s38 = ssub.s32 1024, 1024
      %39 = vsyncadd [#allocation6], %s38
      %s40 = sshll.u32 [#allocation5], 4
      %s41 = int_to_ptr.vmem [resolvable:$true] %s40
      %46 = dma.hbm_to_vmem [thread:$0]  %s5, 1024, %s41, [#allocation6], 64, 64, 4
    $region25: #{mlp_forward.1} parent=1 // pred_fallthru
      _
    // Predicated region
    $region26: #{mlp_forward.1} parent=1 // pred_check
      _
    $region27: #{mlp_forward.1} parent=1 // pred_check_branch
      %48 = sbr.rel (0) target = $region29
    $region28: #{mlp_forward.1} parent=1 // pred_region
      _
    $region29: #{mlp_forward.1} parent=1 // pred_fallthru
      _
    // Predicated region
    $region30: #{mlp_forward.1} parent=1 // pred_check
      _
    $region31: #{mlp_forward.1} parent=1 // pred_check_branch
      %50 = sbr.rel (0) target = $region33
    $region32: #{mlp_forward.1} parent=1 // pred_region
      %51 = dma.done [#allocation3], 1024
    $region33: #{mlp_forward.1} parent=1 // pred_fallthru
      _
    // Predicated region
    $region34: #{mlp_forward.1} parent=1 // pred_check
      _
    $region35: #{mlp_forward.1} parent=1 // pred_check_branch
      %53 = sbr.rel (0) target = $region37
    $region36: #{mlp_forward.1} parent=1 // pred_region
      %54 = dma.done [#allocation6], 1024
    $region37: #{mlp_forward.1} parent=1 // pred_fallthru
      _
    %v56 = vld [vmem:[%s0] sm:$0xf]
    %v57 = vld [vmem:[%s1] sm:$0xf]
    %v58 = vld [vmem:[%s1 + $0x4] sm:$0xf]
    %v59 = vld [vmem:[%s2] sm:$0x1]
    %v60 = vpack.c.bf16 %v56, %v56
    %v62 = vlaneseq
    %v63 = vshrl.u32 %v62, 7
    %v64 = vsub.s32 0, %v63
    %v65 = vrot.slane %v59, %v64
    %v69 = vunpack.c.l.b16 %v57
    %v70 = vunpack.c.l.b16 %v58
    %v71 = vpack.c.b16 %v70, %v69
    %vm73 = vcmask 130048
    %v75 = vsel %vm73, %v60, 0
    %77 = vmatprep.subr.bf16.mxu0 0
    %78 = vmatpush1.bf16.msra.mxu0 %v71
    %79 = vmatprep.subr.bf16.mxu0 0
    %80 = vmatpush1.bf16.msra.mxu0 0
    %81 = vmatprep.subr.bf16.mxu0 0
    %82 = vmatpush1.bf16.msra.mxu0 0
    %83 = vmatprep.subr.bf16.mxu0 0
    %84 = vmatpush1.bf16.msra.mxu0 0
    %85 = vmatprep.subr.bf16.mxu0 0
    %86 = vmatpush1.bf16.msra.mxu0 0
    %87 = vmatprep.subr.bf16.mxu0 0
    %88 = vmatpush1.bf16.msra.mxu0 0
    %89 = vmatprep.subr.bf16.mxu0 0
    %90 = vmatpush1.bf16.msra.mxu0 0
    %91 = vmatprep.subr.bf16.mxu0 0
    %92 = vmatpush1.bf16.msra.mxu0 0
    %93 = vmatprep.subr.bf16.mxu0 0
    %94 = vmatpush1.bf16.msra.mxu0 0
    %95 = vmatprep.subr.bf16.mxu0 0
    %96 = vmatpush1.bf16.msra.mxu0 0
    %97 = vmatprep.subr.bf16.mxu0 0
    %98 = vmatpush1.bf16.msra.mxu0 0
    %99 = vmatprep.subr.bf16.mxu0 0
    %100 = vmatpush1.bf16.msra.mxu0 0
    %101 = vmatprep.subr.bf16.mxu0 0
    %102 = vmatpush1.bf16.msra.mxu0 0
    %103 = vmatprep.subr.bf16.mxu0 0
    %104 = vmatpush1.bf16.msra.mxu0 0
    %105 = vmatprep.subr.bf16.mxu0 0
    %106 = vmatpush1.bf16.msra.mxu0 0
    %107 = vmatprep.subr.bf16.mxu0 0
    %108 = vmatpush1.bf16.msra.mxu0 0
    %109 = vmatprep.mubr.bf16.mxu0 0
    %110 = vmatmul.mubr.bf16.gmra.mrb[0].mxu0 %v75
    %v111 = vpop.f32.mrb[0].mxu0
    %v112 = vadd.f32 %v65, %v111
    %v113 = vpop.f32.mrb[0].mxu0
    %v114 = vpop.f32.mrb[0].mxu0
    %v115 = vpop.f32.mrb[0].mxu0
    %116 = vdwg.mxu0
    %v117 = vmax.f32 %v112, 0.0
    %v118 = vld [vmem:[#allocation2] sm:$0xf]
    %v119 = vld [vmem:[#allocation2 + $0x4] sm:$0xf]
    %v120 = vld [vmem:[#allocation2 + $0x8] sm:$0xf]
    %v121 = vld [vmem:[#allocation2 + $0xc] sm:$0xf]
    %v122 = vld [vmem:[#allocation2 + $0x10] sm:$0xf]
    %v123 = vld [vmem:[#allocation2 + $0x14] sm:$0xf]
    %v124 = vld [vmem:[#allocation2 + $0x18] sm:$0xf]
    %v125 = vld [vmem:[#allocation2 + $0x1c] sm:$0xf]
    %v126 = vld [vmem:[#allocation2 + $0x20] sm:$0xf]
    %v127 = vld [vmem:[#allocation2 + $0x24] sm:$0xf]
    %v128 = vld [vmem:[#allocation2 + $0x28] sm:$0xf]
    %v129 = vld [vmem:[#allocation2 + $0x2c] sm:$0xf]
    %v130 = vld [vmem:[#allocation2 + $0x30] sm:$0xf]
    %v131 = vld [vmem:[#allocation2 + $0x34] sm:$0xf]
    %v132 = vld [vmem:[#allocation2 + $0x38] sm:$0xf]
    %v133 = vld [vmem:[#allocation2 + $0x3c] sm:$0xf]
    %v134 = vld [vmem:[%s4] sm:$0x1]
    %v135 = vpack.c.bf16 %v117, %v117
    %v137 = vlaneseq
    %v138 = vshrl.u32 %v137, 7
    %v139 = vsub.s32 0, %v138
    %v140 = vrot.slane %v134, %v139
    %v158 = vunpack.c.l.b16 %v118
    %v159 = vunpack.c.l.b16 %v119
    %v160 = vunpack.c.l.b16 %v120
    %v161 = vunpack.c.l.b16 %v121
    %v162 = vunpack.c.l.b16 %v122
    %v163 = vunpack.c.l.b16 %v123
    %v164 = vunpack.c.l.b16 %v124
    %v165 = vunpack.c.l.b16 %v125
    %v166 = vunpack.c.l.b16 %v126
    %v167 = vunpack.c.l.b16 %v127
    %v168 = vunpack.c.l.b16 %v128
    %v169 = vunpack.c.l.b16 %v129
    %v170 = vunpack.c.l.b16 %v130
    %v171 = vunpack.c.l.b16 %v131
    %v172 = vunpack.c.l.b16 %v132
    %v173 = vunpack.c.l.b16 %v133
    %v174 = vpack.c.b16 %v159, %v158
    %v175 = vpack.c.b16 %v161, %v160
    %v176 = vpack.c.b16 %v163, %v162
    %v177 = vpack.c.b16 %v165, %v164
    %v178 = vpack.c.b16 %v167, %v166
    %v179 = vpack.c.b16 %v169, %v168
    %v180 = vpack.c.b16 %v171, %v170
    %v181 = vpack.c.b16 %v173, %v172
    %190 = vmatprep.subr.bf16.mxu0 0
    %191 = vmatpush1.bf16.msra.mxu0 %v174
    %192 = vmatprep.subr.bf16.mxu0 0
    %193 = vmatpush1.bf16.msra.mxu0 %v175
    %194 = vmatprep.subr.bf16.mxu0 0
    %195 = vmatpush1.bf16.msra.mxu0 %v176
    %196 = vmatprep.subr.bf16.mxu0 0
    %197 = vmatpush1.bf16.msra.mxu0 %v177
    %198 = vmatprep.subr.bf16.mxu0 0
    %199 = vmatpush1.bf16.msra.mxu0 %v178
    %200 = vmatprep.subr.bf16.mxu0 0
    %201 = vmatpush1.bf16.msra.mxu0 %v179
    %202 = vmatprep.subr.bf16.mxu0 0
    %203 = vmatpush1.bf16.msra.mxu0 %v180
    %204 = vmatprep.subr.bf16.mxu0 0
    %205 = vmatpush1.bf16.msra.mxu0 %v181
    %206 = vmatprep.subr.bf16.mxu0 0
    %207 = vmatpush1.bf16.msra.mxu0 0
    %208 = vmatprep.subr.bf16.mxu0 0
    %209 = vmatpush1.bf16.msra.mxu0 0
    %210 = vmatprep.subr.bf16.mxu0 0
    %211 = vmatpush1.bf16.msra.mxu0 0
    %212 = vmatprep.subr.bf16.mxu0 0
    %213 = vmatpush1.bf16.msra.mxu0 0
    %214 = vmatprep.subr.bf16.mxu0 0
    %215 = vmatpush1.bf16.msra.mxu0 0
    %216 = vmatprep.subr.bf16.mxu0 0
    %217 = vmatpush1.bf16.msra.mxu0 0
    %218 = vmatprep.subr.bf16.mxu0 0
    %219 = vmatpush1.bf16.msra.mxu0 0
    %220 = vmatprep.subr.bf16.mxu0 0
    %221 = vmatpush1.bf16.msra.mxu0 0
    %222 = vmatprep.mubr.bf16.mxu0 0
    %223 = vmatmul.mubr.bf16.gmra.mrb[0].mxu0 %v135
    %v224 = vpop.f32.mrb[0].mxu0
    %v225 = vadd.f32 %v140, %v224
    %v226 = vpop.f32.mrb[0].mxu0
    %v227 = vpop.f32.mrb[0].mxu0
    %v228 = vpop.f32.mrb[0].mxu0
    %229 = vdwg.mxu0
    %v230 = vmax.f32 %v225, 0.0
    %v231 = vld [vmem:[#allocation5] sm:$0xf]
    %v232 = vld [vmem:[#allocation5 + $0x4] sm:$0xf]
    %v233 = vld [vmem:[#allocation5 + $0x8] sm:$0xf]
    %v234 = vld [vmem:[#allocation5 + $0xc] sm:$0xf]
    %v235 = vld [vmem:[#allocation5 + $0x10] sm:$0xf]
    %v236 = vld [vmem:[#allocation5 + $0x14] sm:$0xf]
    %v237 = vld [vmem:[#allocation5 + $0x18] sm:$0xf]
    %v238 = vld [vmem:[#allocation5 + $0x1c] sm:$0xf]
    %v239 = vld [vmem:[#allocation5 + $0x20] sm:$0xf]
    %v240 = vld [vmem:[#allocation5 + $0x24] sm:$0xf]
    %v241 = vld [vmem:[#allocation5 + $0x28] sm:$0xf]
    %v242 = vld [vmem:[#allocation5 + $0x2c] sm:$0xf]
    %v243 = vld [vmem:[#allocation5 + $0x30] sm:$0xf]
    %v244 = vld [vmem:[#allocation5 + $0x34] sm:$0xf]
    %v245 = vld [vmem:[#allocation5 + $0x38] sm:$0xf]
    %v246 = vld [vmem:[#allocation5 + $0x3c] sm:$0xf]
    %v247 = vld [vmem:[%s6] sm:$0x1]
    %v248 = vpack.c.bf16 %v230, %v230
    %v250 = vlaneseq
    %v251 = vshrl.u32 %v250, 7
    %v252 = vsub.s32 0, %v251
    %v253 = vrot.slane %v247, %v252
    %v271 = vunpack.c.l.b16 %v231
    %v272 = vunpack.c.l.b16 %v232
    %v273 = vunpack.c.l.b16 %v233
    %v274 = vunpack.c.l.b16 %v234
    %v275 = vunpack.c.l.b16 %v235
    %v276 = vunpack.c.l.b16 %v236
    %v277 = vunpack.c.l.b16 %v237
    %v278 = vunpack.c.l.b16 %v238
    %v279 = vunpack.c.l.b16 %v239
    %v280 = vunpack.c.l.b16 %v240
    %v281 = vunpack.c.l.b16 %v241
    %v282 = vunpack.c.l.b16 %v242
    %v283 = vunpack.c.l.b16 %v243
    %v284 = vunpack.c.l.b16 %v244
    %v285 = vunpack.c.l.b16 %v245
    %v286 = vunpack.c.l.b16 %v246
    %v287 = vpack.c.b16 %v272, %v271
    %v288 = vpack.c.b16 %v274, %v273
    %v289 = vpack.c.b16 %v276, %v275
    %v290 = vpack.c.b16 %v278, %v277
    %v291 = vpack.c.b16 %v280, %v279
    %v292 = vpack.c.b16 %v282, %v281
    %v293 = vpack.c.b16 %v284, %v283
    %v294 = vpack.c.b16 %v286, %v285
    %303 = vmatprep.subr.bf16.mxu0 0
    %304 = vmatpush1.bf16.msra.mxu0 %v287
    %305 = vmatprep.subr.bf16.mxu0 0
    %306 = vmatpush1.bf16.msra.mxu0 %v288
    %307 = vmatprep.subr.bf16.mxu0 0
    %308 = vmatpush1.bf16.msra.mxu0 %v289
    %309 = vmatprep.subr.bf16.mxu0 0
    %310 = vmatpush1.bf16.msra.mxu0 %v290
    %311 = vmatprep.subr.bf16.mxu0 0
    %312 = vmatpush1.bf16.msra.mxu0 %v291
    %313 = vmatprep.subr.bf16.mxu0 0
    %314 = vmatpush1.bf16.msra.mxu0 %v292
    %315 = vmatprep.subr.bf16.mxu0 0
    %316 = vmatpush1.bf16.msra.mxu0 %v293
    %317 = vmatprep.subr.bf16.mxu0 0
    %318 = vmatpush1.bf16.msra.mxu0 %v294
    %319 = vmatprep.subr.bf16.mxu0 0
    %320 = vmatpush1.bf16.msra.mxu0 0
    %321 = vmatprep.subr.bf16.mxu0 0
    %322 = vmatpush1.bf16.msra.mxu0 0
    %323 = vmatprep.subr.bf16.mxu0 0
    %324 = vmatpush1.bf16.msra.mxu0 0
    %325 = vmatprep.subr.bf16.mxu0 0
    %326 = vmatpush1.bf16.msra.mxu0 0
    %327 = vmatprep.subr.bf16.mxu0 0
    %328 = vmatpush1.bf16.msra.mxu0 0
    %329 = vmatprep.subr.bf16.mxu0 0
    %330 = vmatpush1.bf16.msra.mxu0 0
    %331 = vmatprep.subr.bf16.mxu0 0
    %332 = vmatpush1.bf16.msra.mxu0 0
    %333 = vmatprep.subr.bf16.mxu0 0
    %334 = vmatpush1.bf16.msra.mxu0 0
    %335 = vmatprep.mubr.bf16.mxu0 0
    %336 = vmatmul.mubr.bf16.gmra.mrb[0].mxu0 %v248
    %v337 = vpop.f32.mrb[0].mxu0
    %v338 = vadd.f32 %v253, %v337
    %v339 = vpop.f32.mrb[0].mxu0
    %v340 = vpop.f32.mrb[0].mxu0
    %v341 = vpop.f32.mrb[0].mxu0
    %342 = vdwg.mxu0
    %vm343 = vcmask 60416
    %344 = vst.msk [vmem:[#allocation7] sm:$0xf] %vm343, %v338
    // Predicated region
    $region38: #{mlp_forward.1} parent=1 // pred_check
      _
    $region39: #{mlp_forward.1} parent=1 // pred_check_branch
      %346 = sbr.rel (0) target = $region41
    $region40: #{mlp_forward.1} parent=1 // pred_region
      %s348 = ssub.s32 64, 64
      %349 = vsyncadd [#allocation4], %s348
      %s351 = sshll.u32 [#allocation7], 4
      %s352 = int_to_ptr.vmem [resolvable:$true] %s351
      %354 = dma.vmem_to_hbm [thread:$0]  %s352, 64, %s7, [#allocation4]
    $region41: #{mlp_forward.1} parent=1 // pred_fallthru
      _
    // Predicated region
    $region42: #{mlp_forward.1} parent=1 // pred_check
      _
    $region43: #{mlp_forward.1} parent=1 // pred_check_branch
      %356 = sbr.rel (0) target = $region45
    $region44: #{mlp_forward.1} parent=1 // pred_region
      %357 = dma.done [#allocation4], 64
    $region45: #{mlp_forward.1} parent=1 // pred_fallthru
      _
    %358 = vsyncpa [#allocation3], 1
    %359 = vsyncpa [#allocation6], 1
    %360 = vsyncpa [#allocation4], 1

</llo_original>
